<compile_context>
chip_gen: v7x
topology: tpu7x:2x2x1
jax: 0.10.0
libtpu: 0.0.40
codegen_flags: <defaults>
</compile_context>

<pallas_src>
import functools

import jax
import jax.numpy as jnp
from jax.experimental import pallas as pl
from jax.experimental.pallas import tpu as pltpu


def _round_up(x, m):
    return ((x + m - 1) // m) * m


def _block_diag(a, b):
    """[[a, 0], [0, b]] — lane groups never mix through this weight."""
    za = jnp.zeros((a.shape[0], b.shape[1]), a.dtype)
    zb = jnp.zeros((b.shape[0], a.shape[1]), b.dtype)
    top = jnp.concatenate([a, za], axis=1)
    bot = jnp.concatenate([zb, b], axis=1)
    return jnp.concatenate([top, bot], axis=0)


# -----------------------------------------------------------------------------
# Kernel
# -----------------------------------------------------------------------------
def dann_kernel(
    x_ref,
    fw0, fb0, fw1, fb1, fw2, fb2,              # feature extractor (3 linears)
    hw0, hb0, hw1, hb1, hw2, hb2,              # fused class+domain head (3 hidden linears)
    wlast, blast,                              # fused final projection, (rows, in) layout
    out_ref,                                   # (rows, bt): lane axis = batch (lane-dense)
):
    def linear_relu(h_f32, w_ref, b_ref):
        # bf16 operands on the MXU, f32 accumulation; bias-add / ReLU on the
        # f32 accumulator (VPU).
        acc = jnp.dot(h_f32.astype(jnp.bfloat16), w_ref[...],
                      preferred_element_type=jnp.float32)
        return jnp.maximum(acc + b_ref[...], 0.0)

    # ---- feature extractor (dropout = identity at inference) ----
    h = x_ref[...].astype(jnp.float32)
    h = linear_relu(h, fw0, fb0)
    h = linear_relu(h, fw1, fb1)
    feat = linear_relu(h, fw2, fb2)

    # ---- fused class + domain heads ----
    # ReverseLayerF is identity in the forward pass, so both heads consume
    # `feat`.  Concat / block-diagonal packing keeps the two lane groups
    # independent through the elementwise ReLUs, so the result equals running
    # the two heads separately.
    z = linear_relu(feat, hw0, hb0)
    z = linear_relu(z, hw1, hb1)
    z = linear_relu(z, hw2, hb2)

    # ---- final projection, written transposed: (rows, bt) ----
    zt = z.T.astype(jnp.bfloat16)              # (K, bt); f32 XLU transpose, then cast
    out = jnp.dot(wlast[...], zt, preferred_element_type=jnp.float32) + blast[...]
    out_ref[...] = out.astype(out_ref.dtype)


# -----------------------------------------------------------------------------
# Parameter construction / one-time packing
# -----------------------------------------------------------------------------
def make_dann_params(key, input_size, hidden_size, feature_layer_size,
                     hidden_size_2nd, pre_output_size, output_size,
                     dtype=jnp.float32):
    """Deterministic synthetic params. Weights stored as (in, out), biases (1, out)."""
    dims_feat = [(input_size, hidden_size),
                 (hidden_size, hidden_size),
                 (hidden_size, feature_layer_size)]
    dims_head = [(feature_layer_size, hidden_size_2nd),
                 (hidden_size_2nd, hidden_size_2nd),
                 (hidden_size_2nd, pre_output_size),
                 (pre_output_size, output_size)]

    params = []
    for (din, dout) in dims_feat + dims_head + dims_head:
        key, kw, kb = jax.random.split(key, 3)
        bound = 1.0 / jnp.sqrt(din)
        w = jax.random.uniform(kw, (din, dout), dtype, minval=-bound, maxval=bound)
        b = jax.random.uniform(kb, (1, dout), dtype, minval=-bound, maxval=bound)
        params.extend([w, b])
    return params  # 22 arrays: 6 feat + 8 class + 8 domain


def pack_dann_params(params, compute_dtype=jnp.bfloat16):
    """One-time packing of the 22 per-layer arrays into 14 fused kernel arrays.

    Call this once and reuse the result for every forward call (the packing is
    hoisted out of the hot path on purpose).
    """
    feat = list(params[0:6])
    cw0, cb0, cw1, cb1, cw2, cb2, cw3, cb3 = params[6:14]
    dw0, db0, dw1, db1, dw2, db2, dw3, db3 = params[14:22]

    hw0 = jnp.concatenate([cw0, dw0], axis=1)
    hb0 = jnp.concatenate([cb0, db0], axis=1)
    hw1 = _block_diag(cw1, dw1)
    hb1 = jnp.concatenate([cb1, db1], axis=1)
    hw2 = _block_diag(cw2, dw2)
    hb2 = jnp.concatenate([cb2, db2], axis=1)

    # Final projection in (out_rows, in) layout so the kernel writes a
    # lane-dense (rows, batch) output; rows padded to a sublane multiple.
    out_dim = cw3.shape[1]
    rows = max(8, _round_up(2 * out_dim, 8))
    wlast = _block_diag(cw3, dw3).T                      # (2*out_dim, 2*pre)
    blast = jnp.concatenate([cb3, db3], axis=1).T        # (2*out_dim, 1)
    wlast = jnp.pad(wlast, ((0, rows - 2 * out_dim), (0, 0)))
    blast = jnp.pad(blast, ((0, rows - 2 * out_dim), (0, 0)))

    fused = feat + [hw0, hb0, hw1, hb1, hw2, hb2, wlast, blast]
    packed = []
    for i, p in enumerate(fused):
        is_weight = (i % 2 == 0)
        # Weights -> bf16 (MXU operands); biases stay f32 (added on the f32 acc).
        packed.append(p.astype(compute_dtype if is_weight else jnp.float32))
    return packed  # 14 arrays


# -----------------------------------------------------------------------------
# Batch tiling policy
# -----------------------------------------------------------------------------
def _choose_batch_tiling(B, batch_tile):
    """Returns (bt, B_pad, n_tiles).

    Multi-tile grids require bt to be a multiple of 128 (lane dim of the
    transposed output block), so tiles are balanced multiples of 128 that
    evenly divide round_up(B, 128): padding never exceeds 127 rows total, and
    >=2 tiles are used whenever B > 128 so the "parallel" batch axis can shard
    across v7x's two TensorCores.
    """
    if B <= 128:
        bt = _round_up(max(B, 1), 8)
        return bt, bt, 1
    B_pad = _round_up(B, 128)
    cap = max(128, _round_up(batch_tile, 128))
    bt = 128
    for cand in range(cap, 127, -128):
        if B_pad % cand == 0 and B_pad // cand >= 2:
            bt = cand
            break
    return bt, B_pad, B_pad // bt


# -----------------------------------------------------------------------------
# Forward
# -----------------------------------------------------------------------------
@functools.partial(jax.jit, static_argnames=("output_size", "batch_tile"))
def dann_forward(x, lambda_, packed_params, output_size, batch_tile=512):
    # lambda_ only scales gradients in ReverseLayerF; forward values are
    # unaffected, so it is not consumed inside the kernel.
    del lambda_
    B, Din = x.shape
    rows = packed_params[-1].shape[0]          # padded output rows (class+domain)

    bt, B_pad, n_tiles = _choose_batch_tiling(B, batch_tile)
    if B_pad != B:
        x = jnp.pad(x, ((0, B_pad - B), (0, 0)))

    x_spec = pl.BlockSpec((bt, Din), lambda i: (i, 0))
    # Params: whole array, constant index_map -> VMEM-resident across steps.
    param_specs = [pl.BlockSpec(p.shape, lambda i: (0, 0)) for p in packed_params]
    # Transposed, lane-dense output: (rows, B_pad) with lane axis = batch.
    out_spec = pl.BlockSpec((rows, bt), lambda i: (0, i))

    # Advisory cost estimate for XLA scheduling around the custom call.
    weights = packed_params[0::2]
    flops = int(2 * B_pad * sum(w.shape[0] * w.shape[1] for w in weights))
    bytes_accessed = int(
        x.size * x.dtype.itemsize
        + sum(p.size * p.dtype.itemsize for p in packed_params)
        + rows * B_pad * 4)

    packed_out = pl.pallas_call(
        dann_kernel,
        out_shape=jax.ShapeDtypeStruct((rows, B_pad), jnp.float32),
        grid_spec=pl.GridSpec(
            grid=(n_tiles,),
            in_specs=[x_spec] + param_specs,
            out_specs=out_spec,
        ),
        compiler_params=pltpu.CompilerParams(
            dimension_semantics=("parallel",),
        ),
        cost_estimate=pl.CostEstimate(
            flops=flops, transcendentals=0, bytes_accessed=bytes_accessed),
    )(x, *packed_params)

    class_pred = packed_out[0:output_size, :B].T
    domain_pred = packed_out[output_size:2 * output_size, :B].T
    return class_pred, domain_pred


# -----------------------------------------------------------------------------
# Plain-JAX reference (module semantics, f32, unfused)
# -----------------------------------------------------------------------------
def dann_reference(x, params):
    def lin(h, w, b):
        return h @ w + b

    p = params
    h = jnp.maximum(lin(x, p[0], p[1]), 0.0)
    h = jnp.maximum(lin(h, p[2], p[3]), 0.0)
    feat = jnp.maximum(lin(h, p[4], p[5]), 0.0)

    c = jnp.maximum(lin(feat, p[6], p[7]), 0.0)
    c = jnp.maximum(lin(c, p[8], p[9]), 0.0)
    c = jnp.maximum(lin(c, p[10], p[11]), 0.0)
    class_pred = lin(c, p[12], p[13])

    d = jnp.maximum(lin(feat, p[14], p[15]), 0.0)
    d = jnp.maximum(lin(d, p[16], p[17]), 0.0)
    d = jnp.maximum(lin(d, p[18], p[19]), 0.0)
    domain_pred = lin(d, p[20], p[21])
    return class_pred, domain_pred


if __name__ == "__main__":
    # Small shapes consistent with the module's structure (scaled down).
    input_size = 128
    hidden_size = 128
    feature_layer_size = 128
    hidden_size_2nd = 64
    pre_output_size = 32
    output_size = 1

    key = jax.random.PRNGKey(0)
    key, kp = jax.random.split(key)
    params = make_dann_params(kp, input_size, hidden_size, feature_layer_size,
                              hidden_size_2nd, pre_output_size, output_size)
    packed = pack_dann_params(params)          # one-time packing (hoisted out of forward)
    packed = jax.block_until_ready(packed)

    lambda_ = 0.5  # gradient-reversal strength; no effect on forward values

    # B=30 exercises the single-tile pad-and-slice path; B=300 exercises the
    # multi-tile (3 x 128) balanced-tiling path.
    for B in (30, 300):
        key, kx = jax.random.split(key)
        x = jax.random.normal(kx, (B, input_size), jnp.float32)

        class_pred, domain_pred = dann_forward(x, lambda_, packed, output_size)
        jax.block_until_ready((class_pred, domain_pred))

        ref_c, ref_d = dann_reference(x, params)
        assert class_pred.shape == (B, output_size)
        assert domain_pred.shape == (B, output_size)
        # bf16 MXU operands (f32 accumulation) vs. the f32 reference.
        assert jnp.allclose(class_pred, ref_c, atol=5e-2, rtol=5e-2)
        assert jnp.allclose(domain_pred, ref_d, atol=5e-2, rtol=5e-2)

    print("KERNEL_OK")
</pallas_src>

<mosaic_0001>
module attributes {stable_mosaic.version = 11 : i64} {
  func.func @dann_kernel(%arg0: i32, %arg1: memref<32x128xf32, #tpu.memory_space<vmem>>, %arg2: memref<128x128xbf16, #tpu.memory_space<vmem>>, %arg3: memref<1x128xf32, #tpu.memory_space<vmem>>, %arg4: memref<128x128xbf16, #tpu.memory_space<vmem>>, %arg5: memref<1x128xf32, #tpu.memory_space<vmem>>, %arg6: memref<128x128xbf16, #tpu.memory_space<vmem>>, %arg7: memref<1x128xf32, #tpu.memory_space<vmem>>, %arg8: memref<128x128xbf16, #tpu.memory_space<vmem>>, %arg9: memref<1x128xf32, #tpu.memory_space<vmem>>, %arg10: memref<128x128xbf16, #tpu.memory_space<vmem>>, %arg11: memref<1x128xf32, #tpu.memory_space<vmem>>, %arg12: memref<128x64xbf16, #tpu.memory_space<vmem>>, %arg13: memref<1x64xf32, #tpu.memory_space<vmem>>, %arg14: memref<8x64xbf16, #tpu.memory_space<vmem>>, %arg15: memref<8x1xf32, #tpu.memory_space<vmem>>, %arg16: memref<8x32xf32, #tpu.memory_space<vmem>>) attributes {dimension_semantics = [#tpu.dimension_semantics<parallel>], iteration_bounds = array<i64: 1>, scalar_prefetch = 0 : i64, scratch_operands = 0 : i64, tpu.core_type = #tpu.core_type<tc>, window_params = [{transform_indices = @transform_0, window_bounds = array<i64: 32, 128>}, {pipeline_mode = #tpu.pipeline_mode<synchronous>, transform_indices = @transform_1, window_bounds = array<i64: 128, 128>}, {pipeline_mode = #tpu.pipeline_mode<synchronous>, transform_indices = @transform_2, window_bounds = array<i64: 1, 128>}, {pipeline_mode = #tpu.pipeline_mode<synchronous>, transform_indices = @transform_3, window_bounds = array<i64: 128, 128>}, {pipeline_mode = #tpu.pipeline_mode<synchronous>, transform_indices = @transform_4, window_bounds = array<i64: 1, 128>}, {pipeline_mode = #tpu.pipeline_mode<synchronous>, transform_indices = @transform_5, window_bounds = array<i64: 128, 128>}, {pipeline_mode = #tpu.pipeline_mode<synchronous>, transform_indices = @transform_6, window_bounds = array<i64: 1, 128>}, {pipeline_mode = #tpu.pipeline_mode<synchronous>, transform_indices = @transform_7, window_bounds = array<i64: 128, 128>}, {pipeline_mode = #tpu.pipeline_mode<synchronous>, transform_indices = @transform_8, window_bounds = array<i64: 1, 128>}, {pipeline_mode = #tpu.pipeline_mode<synchronous>, transform_indices = @transform_9, window_bounds = array<i64: 128, 128>}, {pipeline_mode = #tpu.pipeline_mode<synchronous>, transform_indices = @transform_10, window_bounds = array<i64: 1, 128>}, {pipeline_mode = #tpu.pipeline_mode<synchronous>, transform_indices = @transform_11, window_bounds = array<i64: 128, 64>}, {pipeline_mode = #tpu.pipeline_mode<synchronous>, transform_indices = @transform_12, window_bounds = array<i64: 1, 64>}, {pipeline_mode = #tpu.pipeline_mode<synchronous>, transform_indices = @transform_13, window_bounds = array<i64: 8, 64>}, {pipeline_mode = #tpu.pipeline_mode<synchronous>, transform_indices = @transform_14, window_bounds = array<i64: 8, 1>}, {transform_indices = @transform_15, window_bounds = array<i64: 8, 32>}]} {
    %c0 = arith.constant 0 : index
    %c0_0 = arith.constant 0 : index
    %0 = vector.load %arg1[%c0, %c0_0] : memref<32x128xf32, #tpu.memory_space<vmem>>, vector<32x128xf32>
    %1 = arith.truncf %0 : vector<32x128xf32> to vector<32x128xbf16>
    %c0_1 = arith.constant 0 : index
    %c0_2 = arith.constant 0 : index
    %2 = vector.load %arg2[%c0_1, %c0_2] : memref<128x128xbf16, #tpu.memory_space<vmem>>, vector<128x128xbf16>
    %cst = arith.constant dense<0.000000e+00> : vector<32x128xf32>
    %3 = tpu.matmul %1, %2, %cst {dimension_numbers = #tpu.dot_dimension_numbers<[1], [0], [0], [1], [0, 0, 1, 1], [], []>} : vector<32x128xbf16>, vector<128x128xbf16>, vector<32x128xf32> -> vector<32x128xf32>
    %c0_3 = arith.constant 0 : index
    %c0_4 = arith.constant 0 : index
    %4 = vector.load %arg3[%c0_3, %c0_4] : memref<1x128xf32, #tpu.memory_space<vmem>>, vector<1x128xf32>
    %5 = vector.broadcast %4 : vector<1x128xf32> to vector<32x128xf32>
    %6 = arith.addf %3, %5 : vector<32x128xf32>
    %cst_5 = arith.constant 0.000000e+00 : f32
    %7 = vector.broadcast %cst_5 : f32 to vector<32x128xf32>
    %8 = arith.maximumf %6, %7 : vector<32x128xf32>
    %9 = arith.truncf %8 : vector<32x128xf32> to vector<32x128xbf16>
    %c0_6 = arith.constant 0 : index
    %c0_7 = arith.constant 0 : index
    %10 = vector.load %arg4[%c0_6, %c0_7] : memref<128x128xbf16, #tpu.memory_space<vmem>>, vector<128x128xbf16>
    %cst_8 = arith.constant dense<0.000000e+00> : vector<32x128xf32>
    %11 = tpu.matmul %9, %10, %cst_8 {dimension_numbers = #tpu.dot_dimension_numbers<[1], [0], [0], [1], [0, 0, 1, 1], [], []>} : vector<32x128xbf16>, vector<128x128xbf16>, vector<32x128xf32> -> vector<32x128xf32>
    %c0_9 = arith.constant 0 : index
    %c0_10 = arith.constant 0 : index
    %12 = vector.load %arg5[%c0_9, %c0_10] : memref<1x128xf32, #tpu.memory_space<vmem>>, vector<1x128xf32>
    %13 = vector.broadcast %12 : vector<1x128xf32> to vector<32x128xf32>
    %14 = arith.addf %11, %13 : vector<32x128xf32>
    %cst_11 = arith.constant 0.000000e+00 : f32
    %15 = vector.broadcast %cst_11 : f32 to vector<32x128xf32>
    %16 = arith.maximumf %14, %15 : vector<32x128xf32>
    %17 = arith.truncf %16 : vector<32x128xf32> to vector<32x128xbf16>
    %c0_12 = arith.constant 0 : index
    %c0_13 = arith.constant 0 : index
    %18 = vector.load %arg6[%c0_12, %c0_13] : memref<128x128xbf16, #tpu.memory_space<vmem>>, vector<128x128xbf16>
    %cst_14 = arith.constant dense<0.000000e+00> : vector<32x128xf32>
    %19 = tpu.matmul %17, %18, %cst_14 {dimension_numbers = #tpu.dot_dimension_numbers<[1], [0], [0], [1], [0, 0, 1, 1], [], []>} : vector<32x128xbf16>, vector<128x128xbf16>, vector<32x128xf32> -> vector<32x128xf32>
    %c0_15 = arith.constant 0 : index
    %c0_16 = arith.constant 0 : index
    %20 = vector.load %arg7[%c0_15, %c0_16] : memref<1x128xf32, #tpu.memory_space<vmem>>, vector<1x128xf32>
    %21 = vector.broadcast %20 : vector<1x128xf32> to vector<32x128xf32>
    %22 = arith.addf %19, %21 : vector<32x128xf32>
    %cst_17 = arith.constant 0.000000e+00 : f32
    %23 = vector.broadcast %cst_17 : f32 to vector<32x128xf32>
    %24 = arith.maximumf %22, %23 : vector<32x128xf32>
    %25 = arith.truncf %24 : vector<32x128xf32> to vector<32x128xbf16>
    %c0_18 = arith.constant 0 : index
    %c0_19 = arith.constant 0 : index
    %26 = vector.load %arg8[%c0_18, %c0_19] : memref<128x128xbf16, #tpu.memory_space<vmem>>, vector<128x128xbf16>
    %cst_20 = arith.constant dense<0.000000e+00> : vector<32x128xf32>
    %27 = tpu.matmul %25, %26, %cst_20 {dimension_numbers = #tpu.dot_dimension_numbers<[1], [0], [0], [1], [0, 0, 1, 1], [], []>} : vector<32x128xbf16>, vector<128x128xbf16>, vector<32x128xf32> -> vector<32x128xf32>
    %c0_21 = arith.constant 0 : index
    %c0_22 = arith.constant 0 : index
    %28 = vector.load %arg9[%c0_21, %c0_22] : memref<1x128xf32, #tpu.memory_space<vmem>>, vector<1x128xf32>
    %29 = vector.broadcast %28 : vector<1x128xf32> to vector<32x128xf32>
    %30 = arith.addf %27, %29 : vector<32x128xf32>
    %cst_23 = arith.constant 0.000000e+00 : f32
    %31 = vector.broadcast %cst_23 : f32 to vector<32x128xf32>
    %32 = arith.maximumf %30, %31 : vector<32x128xf32>
    %33 = arith.truncf %32 : vector<32x128xf32> to vector<32x128xbf16>
    %c0_24 = arith.constant 0 : index
    %c0_25 = arith.constant 0 : index
    %34 = vector.load %arg10[%c0_24, %c0_25] : memref<128x128xbf16, #tpu.memory_space<vmem>>, vector<128x128xbf16>
    %cst_26 = arith.constant dense<0.000000e+00> : vector<32x128xf32>
    %35 = tpu.matmul %33, %34, %cst_26 {dimension_numbers = #tpu.dot_dimension_numbers<[1], [0], [0], [1], [0, 0, 1, 1], [], []>} : vector<32x128xbf16>, vector<128x128xbf16>, vector<32x128xf32> -> vector<32x128xf32>
    %c0_27 = arith.constant 0 : index
    %c0_28 = arith.constant 0 : index
    %36 = vector.load %arg11[%c0_27, %c0_28] : memref<1x128xf32, #tpu.memory_space<vmem>>, vector<1x128xf32>
    %37 = vector.broadcast %36 : vector<1x128xf32> to vector<32x128xf32>
    %38 = arith.addf %35, %37 : vector<32x128xf32>
    %cst_29 = arith.constant 0.000000e+00 : f32
    %39 = vector.broadcast %cst_29 : f32 to vector<32x128xf32>
    %40 = arith.maximumf %38, %39 : vector<32x128xf32>
    %41 = arith.truncf %40 : vector<32x128xf32> to vector<32x128xbf16>
    %c0_30 = arith.constant 0 : index
    %c0_31 = arith.constant 0 : index
    %42 = vector.load %arg12[%c0_30, %c0_31] : memref<128x64xbf16, #tpu.memory_space<vmem>>, vector<128x64xbf16>
    %cst_32 = arith.constant dense<0.000000e+00> : vector<32x64xf32>
    %43 = tpu.matmul %41, %42, %cst_32 {dimension_numbers = #tpu.dot_dimension_numbers<[1], [0], [0], [1], [0, 0, 1, 1], [], []>} : vector<32x128xbf16>, vector<128x64xbf16>, vector<32x64xf32> -> vector<32x64xf32>
    %c0_33 = arith.constant 0 : index
    %c0_34 = arith.constant 0 : index
    %44 = vector.load %arg13[%c0_33, %c0_34] : memref<1x64xf32, #tpu.memory_space<vmem>>, vector<1x64xf32>
    %45 = vector.broadcast %44 : vector<1x64xf32> to vector<32x64xf32>
    %46 = arith.addf %43, %45 : vector<32x64xf32>
    %cst_35 = arith.constant 0.000000e+00 : f32
    %47 = vector.broadcast %cst_35 : f32 to vector<32x64xf32>
    %48 = arith.maximumf %46, %47 : vector<32x64xf32>
    %49 = tpu.transpose %48, [1, 0] : vector<32x64xf32> -> vector<64x32xf32>
    %50 = arith.truncf %49 : vector<64x32xf32> to vector<64x32xbf16>
    %c0_36 = arith.constant 0 : index
    %c0_37 = arith.constant 0 : index
    %51 = vector.load %arg14[%c0_36, %c0_37] : memref<8x64xbf16, #tpu.memory_space<vmem>>, vector<8x64xbf16>
    %cst_38 = arith.constant dense<0.000000e+00> : vector<8x32xf32>
    %52 = tpu.matmul %51, %50, %cst_38 {dimension_numbers = #tpu.dot_dimension_numbers<[1], [0], [0], [1], [0, 0, 1, 1], [], []>} : vector<8x64xbf16>, vector<64x32xbf16>, vector<8x32xf32> -> vector<8x32xf32>
    %c0_39 = arith.constant 0 : index
    %c0_40 = arith.constant 0 : index
    %53 = vector.load %arg15[%c0_39, %c0_40] : memref<8x1xf32, #tpu.memory_space<vmem>>, vector<8x1xf32>
    %54 = vector.broadcast %53 : vector<8x1xf32> to vector<8x32xf32>
    %55 = arith.addf %52, %54 : vector<8x32xf32>
    %c0_41 = arith.constant 0 : index
    %c0_42 = arith.constant 0 : index
    %56 = vector.load %arg16[%c0_41, %c0_42] : memref<8x32xf32, #tpu.memory_space<vmem>>, vector<8x32xf32>
    tpu.vector_store %arg16[%c0_41, %c0_42], %55 {strides = array<i32>} : memref<8x32xf32, #tpu.memory_space<vmem>>, vector<8x32xf32>,
    return
  }
  func.func @transform_0(%arg0: i32) -> (i32, i32) {
    %c0_i32 = arith.constant 0 : i32
    %c0_i32_0 = arith.constant 0 : i32
    return %arg0, %c0_i32 : i32, i32
  }
  func.func @transform_1(%arg0: i32) -> (i32, i32) {
    %c0_i32 = arith.constant 0 : i32
    %c0_i32_0 = arith.constant 0 : i32
    %c0_i32_1 = arith.constant 0 : i32
    return %c0_i32, %c0_i32_0 : i32, i32
  }
  func.func @transform_2(%arg0: i32) -> (i32, i32) {
    %c0_i32 = arith.constant 0 : i32
    %c0_i32_0 = arith.constant 0 : i32
    %c0_i32_1 = arith.constant 0 : i32
    return %c0_i32, %c0_i32_0 : i32, i32
  }
  func.func @transform_3(%arg0: i32) -> (i32, i32) {
    %c0_i32 = arith.constant 0 : i32
    %c0_i32_0 = arith.constant 0 : i32
    %c0_i32_1 = arith.constant 0 : i32
    return %c0_i32, %c0_i32_0 : i32, i32
  }
  func.func @transform_4(%arg0: i32) -> (i32, i32) {
    %c0_i32 = arith.constant 0 : i32
    %c0_i32_0 = arith.constant 0 : i32
    %c0_i32_1 = arith.constant 0 : i32
    return %c0_i32, %c0_i32_0 : i32, i32
  }
  func.func @transform_5(%arg0: i32) -> (i32, i32) {
    %c0_i32 = arith.constant 0 : i32
    %c0_i32_0 = arith.constant 0 : i32
    %c0_i32_1 = arith.constant 0 : i32
    return %c0_i32, %c0_i32_0 : i32, i32
  }
  func.func @transform_6(%arg0: i32) -> (i32, i32) {
    %c0_i32 = arith.constant 0 : i32
    %c0_i32_0 = arith.constant 0 : i32
    %c0_i32_1 = arith.constant 0 : i32
    return %c0_i32, %c0_i32_0 : i32, i32
  }
  func.func @transform_7(%arg0: i32) -> (i32, i32) {
    %c0_i32 = arith.constant 0 : i32
    %c0_i32_0 = arith.constant 0 : i32
    %c0_i32_1 = arith.constant 0 : i32
    return %c0_i32, %c0_i32_0 : i32, i32
  }
  func.func @transform_8(%arg0: i32) -> (i32, i32) {
    %c0_i32 = arith.constant 0 : i32
    %c0_i32_0 = arith.constant 0 : i32
    %c0_i32_1 = arith.constant 0 : i32
    return %c0_i32, %c0_i32_0 : i32, i32
  }
  func.func @transform_9(%arg0: i32) -> (i32, i32) {
    %c0_i32 = arith.constant 0 : i32
    %c0_i32_0 = arith.constant 0 : i32
    %c0_i32_1 = arith.constant 0 : i32
    return %c0_i32, %c0_i32_0 : i32, i32
  }
  func.func @transform_10(%arg0: i32) -> (i32, i32) {
    %c0_i32 = arith.constant 0 : i32
    %c0_i32_0 = arith.constant 0 : i32
    %c0_i32_1 = arith.constant 0 : i32
    return %c0_i32, %c0_i32_0 : i32, i32
  }
  func.func @transform_11(%arg0: i32) -> (i32, i32) {
    %c0_i32 = arith.constant 0 : i32
    %c0_i32_0 = arith.constant 0 : i32
    %c0_i32_1 = arith.constant 0 : i32
    return %c0_i32, %c0_i32_0 : i32, i32
  }
  func.func @transform_12(%arg0: i32) -> (i32, i32) {
    %c0_i32 = arith.constant 0 : i32
    %c0_i32_0 = arith.constant 0 : i32
    %c0_i32_1 = arith.constant 0 : i32
    return %c0_i32, %c0_i32_0 : i32, i32
  }
  func.func @transform_13(%arg0: i32) -> (i32, i32) {
    %c0_i32 = arith.constant 0 : i32
    %c0_i32_0 = arith.constant 0 : i32
    %c0_i32_1 = arith.constant 0 : i32
    return %c0_i32, %c0_i32_0 : i32, i32
  }
  func.func @transform_14(%arg0: i32) -> (i32, i32) {
    %c0_i32 = arith.constant 0 : i32
    %c0_i32_0 = arith.constant 0 : i32
    %c0_i32_1 = arith.constant 0 : i32
    return %c0_i32, %c0_i32_0 : i32, i32
  }
  func.func @transform_15(%arg0: i32) -> (i32, i32) {
    %c0_i32 = arith.constant 0 : i32
    %c0_i32_0 = arith.constant 0 : i32
    return %c0_i32, %arg0 : i32, i32
  }
}

</mosaic_0001>

<llo_original>
// kernel: dann_forward.1
$region0: #{dann_forward.1}
  #allocation0 [shape = 'u32[]', space=smem, size = 0x4, offset = 0x4, fixed_abs, tag = 'smem constant byte address 0x4 - core index']
  #allocation1 [shape = 'u32[144,128]{1,0:T(1,128)}', space=vmem, size = 0x12000, scoped, tag = 'internal scratch']
  %s0 = inlined_call_operand.vmem [shape: f32[32,128], index: 0, kind: input, shape index: {}]
  %s1 = inlined_call_operand.vmem [shape: bf16[128,128], index: 1, kind: input, shape index: {}]
  %s2 = inlined_call_operand.hbm [shape: f32[1,128], index: 2, kind: input, shape index: {}]
  %s3 = inlined_call_operand.vmem [shape: bf16[128,128], index: 3, kind: input, shape index: {}]
  %s4 = inlined_call_operand.hbm [shape: f32[1,128], index: 4, kind: input, shape index: {}]
  %s5 = inlined_call_operand.hbm [shape: bf16[128,128], index: 5, kind: input, shape index: {}]
  %s6 = inlined_call_operand.hbm [shape: f32[1,128], index: 6, kind: input, shape index: {}]
  %s7 = inlined_call_operand.vmem [shape: bf16[128,128], index: 7, kind: input, shape index: {}]
  %s8 = inlined_call_operand.vmem [shape: f32[1,128], index: 8, kind: input, shape index: {}]
  %s9 = inlined_call_operand.hbm [shape: bf16[128,128], index: 9, kind: input, shape index: {}]
  %s10 = inlined_call_operand.vmem [shape: f32[1,128], index: 10, kind: input, shape index: {}]
  %s11 = inlined_call_operand.vmem [shape: bf16[128,64], index: 11, kind: input, shape index: {}]
  %s12 = inlined_call_operand.vmem [shape: f32[1,64], index: 12, kind: input, shape index: {}]
  %s13 = inlined_call_operand.vmem [shape: bf16[8,64], index: 13, kind: input, shape index: {}]
  %s14 = inlined_call_operand.vmem [shape: f32[8,1], index: 14, kind: input, shape index: {}]
  %s15 = inlined_call_operand.vmem [shape: f32[8,32], index: 15, kind: output, shape index: {}]
  %s16 = sld [smem:[#allocation0]]
  $region90: #{dann_forward.1} parent=0
    _
  %s18 = ssub.s32 1, %s16
  %s19 = scalar_select 0, %s18, %s16
  $region1: #{dann_forward.1} parent=0
    #allocation2 [shape = 'u8[512]{0}', space=vmem, size = 0x400, scoped, tag = 'input window, operand 2, single buffered']
    #allocation3 [shape = 's32[1]{0}', space=sflag, size = 0x4, scoped, tag = 'scoped memory for dann_forward.1']
    #allocation4 [shape = 'u8[512]{0}', space=vmem, size = 0x400, scoped, tag = 'input window, operand 4, single buffered']
    #allocation5 [shape = 's32[1]{0}', space=sflag, size = 0x4, scoped, tag = 'scoped memory for dann_forward.1']
    #allocation6 [shape = 'u8[32768]{0}', space=vmem, size = 0x8000, scoped, tag = 'input window, operand 5, single buffered']
    #allocation7 [shape = 'u8[512]{0}', space=vmem, size = 0x400, scoped, tag = 'input window, operand 6, single buffered']
    #allocation8 [shape = 's32[1]{0}', space=sflag, size = 0x4, scoped, tag = 'scoped memory for dann_forward.1']
    #allocation9 [shape = 'u8[32768]{0}', space=vmem, size = 0x8000, scoped, tag = 'input window, operand 9, single buffered']
    %20 = vsyncpa [#allocation3], 0
    %21 = vsyncpa [#allocation5], 0
    %22 = vsyncpa [#allocation8], 0
    // Predicated region
    $region2: #{dann_forward.1} parent=1 // pred_check
      _
    $region3: #{dann_forward.1} parent=1 // pred_check_branch
      %24 = sbr.rel (0) target = $region5
    $region4: #{dann_forward.1} parent=1 // pred_region
      _
    $region5: #{dann_forward.1} parent=1 // pred_fallthru
      _
    // Predicated region
    $region6: #{dann_forward.1} parent=1 // pred_check
      _
    $region7: #{dann_forward.1} parent=1 // pred_check_branch
      %26 = sbr.rel (0) target = $region9
    $region8: #{dann_forward.1} parent=1 // pred_region
      _
    $region9: #{dann_forward.1} parent=1 // pred_fallthru
      _
    // Predicated region
    $region10: #{dann_forward.1} parent=1 // pred_check
      _
    $region11: #{dann_forward.1} parent=1 // pred_check_branch
      %28 = sbr.rel (0) target = $region13
    $region12: #{dann_forward.1} parent=1 // pred_region
      %s30 = ssub.s32 16, 16
      %31 = vsyncadd [#allocation3], %s30
      %s33 = sshll.u32 [#allocation2], 4
      %s34 = int_to_ptr.vmem [resolvable:$true] %s33
      %36 = dma.hbm_to_vmem [thread:$0]  %s2, 16, %s34, [#allocation3]
    $region13: #{dann_forward.1} parent=1 // pred_fallthru
      _
    // Predicated region
    $region14: #{dann_forward.1} parent=1 // pred_check
      _
    $region15: #{dann_forward.1} parent=1 // pred_check_branch
      %38 = sbr.rel (0) target = $region17
    $region16: #{dann_forward.1} parent=1 // pred_region
      _
    $region17: #{dann_forward.1} parent=1 // pred_fallthru
      _
    // Predicated region
    $region18: #{dann_forward.1} parent=1 // pred_check
      _
    $region19: #{dann_forward.1} parent=1 // pred_check_branch
      %40 = sbr.rel (0) target = $region21
    $region20: #{dann_forward.1} parent=1 // pred_region
      %s42 = ssub.s32 16, 16
      %43 = vsyncadd [#allocation5], %s42
      %s45 = sshll.u32 [#allocation4], 4
      %s46 = int_to_ptr.vmem [resolvable:$true] %s45
      %48 = dma.hbm_to_vmem [thread:$0]  %s4, 16, %s46, [#allocation5]
    $region21: #{dann_forward.1} parent=1 // pred_fallthru
      _
    // Predicated region
    $region22: #{dann_forward.1} parent=1 // pred_check
      _
    $region23: #{dann_forward.1} parent=1 // pred_check_branch
      %50 = sbr.rel (0) target = $region25
    $region24: #{dann_forward.1} parent=1 // pred_region
      %s52 = ssub.s32 1024, 1024
      %53 = vsyncadd [#allocation5], %s52
      %s54 = sshll.u32 [#allocation6], 4
      %s55 = int_to_ptr.vmem [resolvable:$true] %s54
      %60 = dma.hbm_to_vmem [thread:$0]  %s5, 1024, %s55, [#allocation5], 64, 64, 4
    $region25: #{dann_forward.1} parent=1 // pred_fallthru
      _
    // Predicated region
    $region26: #{dann_forward.1} parent=1 // pred_check
      _
    $region27: #{dann_forward.1} parent=1 // pred_check_branch
      %62 = sbr.rel (0) target = $region29
    $region28: #{dann_forward.1} parent=1 // pred_region
      %s64 = ssub.s32 16, 16
      %65 = vsyncadd [#allocation8], %s64
      %s67 = sshll.u32 [#allocation7], 4
      %s68 = int_to_ptr.vmem [resolvable:$true] %s67
      %70 = dma.hbm_to_vmem [thread:$0]  %s6, 16, %s68, [#allocation8]
    $region29: #{dann_forward.1} parent=1 // pred_fallthru
      _
    // Predicated region
    $region30: #{dann_forward.1} parent=1 // pred_check
      _
    $region31: #{dann_forward.1} parent=1 // pred_check_branch
      %72 = sbr.rel (0) target = $region33
    $region32: #{dann_forward.1} parent=1 // pred_region
      _
    $region33: #{dann_forward.1} parent=1 // pred_fallthru
      _
    // Predicated region
    $region34: #{dann_forward.1} parent=1 // pred_check
      _
    $region35: #{dann_forward.1} parent=1 // pred_check_branch
      %74 = sbr.rel (0) target = $region37
    $region36: #{dann_forward.1} parent=1 // pred_region
      _
    $region37: #{dann_forward.1} parent=1 // pred_fallthru
      _
    // Predicated region
    $region38: #{dann_forward.1} parent=1 // pred_check
      _
    $region39: #{dann_forward.1} parent=1 // pred_check_branch
      %76 = sbr.rel (0) target = $region41
    $region40: #{dann_forward.1} parent=1 // pred_region
      %s78 = ssub.s32 1024, 1024
      %79 = vsyncadd [#allocation8], %s78
      %s80 = sshll.u32 [#allocation9], 4
      %s81 = int_to_ptr.vmem [resolvable:$true] %s80
      %86 = dma.hbm_to_vmem [thread:$0]  %s9, 1024, %s81, [#allocation8], 64, 64, 4
    $region41: #{dann_forward.1} parent=1 // pred_fallthru
      _
    // Predicated region
    $region42: #{dann_forward.1} parent=1 // pred_check
      _
    $region43: #{dann_forward.1} parent=1 // pred_check_branch
      %88 = sbr.rel (0) target = $region45
    $region44: #{dann_forward.1} parent=1 // pred_region
      _
    $region45: #{dann_forward.1} parent=1 // pred_fallthru
      _
    // Predicated region
    $region46: #{dann_forward.1} parent=1 // pred_check
      _
    $region47: #{dann_forward.1} parent=1 // pred_check_branch
      %90 = sbr.rel (0) target = $region49
    $region48: #{dann_forward.1} parent=1 // pred_region
      _
    $region49: #{dann_forward.1} parent=1 // pred_fallthru
      _
    // Predicated region
    $region50: #{dann_forward.1} parent=1 // pred_check
      _
    $region51: #{dann_forward.1} parent=1 // pred_check_branch
      %92 = sbr.rel (0) target = $region53
    $region52: #{dann_forward.1} parent=1 // pred_region
      _
    $region53: #{dann_forward.1} parent=1 // pred_fallthru
      _
    // Predicated region
    $region54: #{dann_forward.1} parent=1 // pred_check
      _
    $region55: #{dann_forward.1} parent=1 // pred_check_branch
      %94 = sbr.rel (0) target = $region57
    $region56: #{dann_forward.1} parent=1 // pred_region
      _
    $region57: #{dann_forward.1} parent=1 // pred_fallthru
      _
    // Predicated region
    $region58: #{dann_forward.1} parent=1 // pred_check
      _
    $region59: #{dann_forward.1} parent=1 // pred_check_branch
      %96 = sbr.rel (0) target = $region61
    $region60: #{dann_forward.1} parent=1 // pred_region
      _
    $region61: #{dann_forward.1} parent=1 // pred_fallthru
      _
    // Predicated region
    $region62: #{dann_forward.1} parent=1 // pred_check
      _
    $region63: #{dann_forward.1} parent=1 // pred_check_branch
      %98 = sbr.rel (0) target = $region65
    $region64: #{dann_forward.1} parent=1 // pred_region
      %99 = dma.done [#allocation3], 16
    $region65: #{dann_forward.1} parent=1 // pred_fallthru
      _
    // Predicated region
    $region66: #{dann_forward.1} parent=1 // pred_check
      _
    $region67: #{dann_forward.1} parent=1 // pred_check_branch
      %101 = sbr.rel (0) target = $region69
    $region68: #{dann_forward.1} parent=1 // pred_region
      %102 = dma.done [#allocation5], 16
    $region69: #{dann_forward.1} parent=1 // pred_fallthru
      _
    // Predicated region
    $region70: #{dann_forward.1} parent=1 // pred_check
      _
    $region71: #{dann_forward.1} parent=1 // pred_check_branch
      %104 = sbr.rel (0) target = $region73
    $region72: #{dann_forward.1} parent=1 // pred_region
      %105 = dma.done [#allocation5], 1024
    $region73: #{dann_forward.1} parent=1 // pred_fallthru
      _
    // Predicated region
    $region74: #{dann_forward.1} parent=1 // pred_check
      _
    $region75: #{dann_forward.1} parent=1 // pred_check_branch
      %107 = sbr.rel (0) target = $region77
    $region76: #{dann_forward.1} parent=1 // pred_region
      %108 = dma.done [#allocation8], 16
    $region77: #{dann_forward.1} parent=1 // pred_fallthru
      _
    // Predicated region
    $region78: #{dann_forward.1} parent=1 // pred_check
      _
    $region79: #{dann_forward.1} parent=1 // pred_check_branch
      %110 = sbr.rel (0) target = $region81
    $region80: #{dann_forward.1} parent=1 // pred_region
      %111 = dma.done [#allocation8], 1024
    $region81: #{dann_forward.1} parent=1 // pred_fallthru
      _
    %v113 = vld [vmem:[%s0] sm:$0xff]
    %v114 = vld [vmem:[%s0 + $0x8] sm:$0xff]
    %v115 = vld [vmem:[%s0 + $0x10] sm:$0xff]
    %v116 = vld [vmem:[%s0 + $0x18] sm:$0xff]
    %v117 = vpack.c.bf16 %v114, %v113
    %v118 = vpack.c.bf16 %v116, %v115
    %v119 = vld [vmem:[%s1] sm:$0xf]
    %v120 = vld [vmem:[%s1 + $0x4] sm:$0xf]
    %v121 = vld [vmem:[%s1 + $0x8] sm:$0xf]
    %v122 = vld [vmem:[%s1 + $0xc] sm:$0xf]
    %v123 = vld [vmem:[%s1 + $0x10] sm:$0xf]
    %v124 = vld [vmem:[%s1 + $0x14] sm:$0xf]
    %v125 = vld [vmem:[%s1 + $0x18] sm:$0xf]
    %v126 = vld [vmem:[%s1 + $0x1c] sm:$0xf]
    %v127 = vld [vmem:[%s1 + $0x20] sm:$0xf]
    %v128 = vld [vmem:[%s1 + $0x24] sm:$0xf]
    %v129 = vld [vmem:[%s1 + $0x28] sm:$0xf]
    %v130 = vld [vmem:[%s1 + $0x2c] sm:$0xf]
    %v131 = vld [vmem:[%s1 + $0x30] sm:$0xf]
    %v132 = vld [vmem:[%s1 + $0x34] sm:$0xf]
    %v133 = vld [vmem:[%s1 + $0x38] sm:$0xf]
    %v134 = vld [vmem:[%s1 + $0x3c] sm:$0xf]
    %v135 = vld [vmem:[#allocation2] sm:$0x1]
    %v137 = vlaneseq
    %v138 = vshrl.u32 %v137, 7
    %v139 = vsub.s32 0, %v138
    %v140 = vrot.slane %v135, %v139
    %v158 = vunpack.c.l.b16 %v119
    %v159 = vunpack.c.l.b16 %v120
    %v160 = vunpack.c.l.b16 %v121
    %v161 = vunpack.c.l.b16 %v122
    %v162 = vunpack.c.l.b16 %v123
    %v163 = vunpack.c.l.b16 %v124
    %v164 = vunpack.c.l.b16 %v125
    %v165 = vunpack.c.l.b16 %v126
    %v166 = vunpack.c.l.b16 %v127
    %v167 = vunpack.c.l.b16 %v128
    %v168 = vunpack.c.l.b16 %v129
    %v169 = vunpack.c.l.b16 %v130
    %v170 = vunpack.c.l.b16 %v131
    %v171 = vunpack.c.l.b16 %v132
    %v172 = vunpack.c.l.b16 %v133
    %v173 = vunpack.c.l.b16 %v134
    %v174 = vpack.c.b16 %v159, %v158
    %v175 = vpack.c.b16 %v161, %v160
    %v176 = vpack.c.b16 %v163, %v162
    %v177 = vpack.c.b16 %v165, %v164
    %v178 = vpack.c.b16 %v167, %v166
    %v179 = vpack.c.b16 %v169, %v168
    %v180 = vpack.c.b16 %v171, %v170
    %v181 = vpack.c.b16 %v173, %v172
    %190 = vmatprep.subr.bf16.mxu0 0
    %191 = vmatpush1.bf16.msra.mxu0 %v174
    %192 = vmatprep.subr.bf16.mxu0 0
    %193 = vmatpush1.bf16.msra.mxu0 %v175
    %194 = vmatprep.subr.bf16.mxu0 0
    %195 = vmatpush1.bf16.msra.mxu0 %v176
    %196 = vmatprep.subr.bf16.mxu0 0
    %197 = vmatpush1.bf16.msra.mxu0 %v177
    %198 = vmatprep.subr.bf16.mxu0 0
    %199 = vmatpush1.bf16.msra.mxu0 %v178
    %200 = vmatprep.subr.bf16.mxu0 0
    %201 = vmatpush1.bf16.msra.mxu0 %v179
    %202 = vmatprep.subr.bf16.mxu0 0
    %203 = vmatpush1.bf16.msra.mxu0 %v180
    %204 = vmatprep.subr.bf16.mxu0 0
    %205 = vmatpush1.bf16.msra.mxu0 %v181
    %206 = vmatprep.subr.bf16.mxu0 0
    %207 = vmatpush1.bf16.msra.mxu0 0
    %208 = vmatprep.subr.bf16.mxu0 0
    %209 = vmatpush1.bf16.msra.mxu0 0
    %210 = vmatprep.subr.bf16.mxu0 0
    %211 = vmatpush1.bf16.msra.mxu0 0
    %212 = vmatprep.subr.bf16.mxu0 0
    %213 = vmatpush1.bf16.msra.mxu0 0
    %214 = vmatprep.subr.bf16.mxu0 0
    %215 = vmatpush1.bf16.msra.mxu0 0
    %216 = vmatprep.subr.bf16.mxu0 0
    %217 = vmatpush1.bf16.msra.mxu0 0
    %218 = vmatprep.subr.bf16.mxu0 0
    %219 = vmatpush1.bf16.msra.mxu0 0
    %220 = vmatprep.subr.bf16.mxu0 0
    %221 = vmatpush1.bf16.msra.mxu0 0
    %222 = vmatprep.mubr.bf16.mxu0 0
    %223 = vmatmul.mubr.bf16.gmra.mrb[0].mxu0 %v117
    %v224 = vpop.f32.mrb[0].mxu0
    %v225 = vadd.f32 %v140, %v224
    %v226 = vpop.f32.mrb[0].mxu0
    %v227 = vpop.f32.mrb[0].mxu0
    %v228 = vadd.f32 %v140, %v227
    %v229 = vpop.f32.mrb[0].mxu0
    %230 = vmatprep.mubr.bf16.mxu0 0
    %231 = vmatmul.mubr.bf16.gmra.mrb[0].mxu0 %v118
    %v232 = vpop.f32.mrb[0].mxu0
    %v233 = vadd.f32 %v140, %v232
    %v234 = vpop.f32.mrb[0].mxu0
    %v235 = vpop.f32.mrb[0].mxu0
    %v236 = vadd.f32 %v140, %v235
    %v237 = vpop.f32.mrb[0].mxu0
    %238 = vdwg.mxu0
    %v239 = vmax.f32 %v225, 0.0
    %v240 = vmax.f32 %v228, 0.0
    %v241 = vmax.f32 %v233, 0.0
    %v242 = vmax.f32 %v236, 0.0
    %v243 = vpack.c.bf16 %v240, %v239
    %v244 = vpack.c.bf16 %v242, %v241
    %v245 = vld [vmem:[%s3] sm:$0xf]
    %v246 = vld [vmem:[%s3 + $0x4] sm:$0xf]
    %v247 = vld [vmem:[%s3 + $0x8] sm:$0xf]
    %v248 = vld [vmem:[%s3 + $0xc] sm:$0xf]
    %v249 = vld [vmem:[%s3 + $0x10] sm:$0xf]
    %v250 = vld [vmem:[%s3 + $0x14] sm:$0xf]
    %v251 = vld [vmem:[%s3 + $0x18] sm:$0xf]
    %v252 = vld [vmem:[%s3 + $0x1c] sm:$0xf]
    %v253 = vld [vmem:[%s3 + $0x20] sm:$0xf]
    %v254 = vld [vmem:[%s3 + $0x24] sm:$0xf]
    %v255 = vld [vmem:[%s3 + $0x28] sm:$0xf]
    %v256 = vld [vmem:[%s3 + $0x2c] sm:$0xf]
    %v257 = vld [vmem:[%s3 + $0x30] sm:$0xf]
    %v258 = vld [vmem:[%s3 + $0x34] sm:$0xf]
    %v259 = vld [vmem:[%s3 + $0x38] sm:$0xf]
    %v260 = vld [vmem:[%s3 + $0x3c] sm:$0xf]
    %v261 = vld [vmem:[#allocation4] sm:$0x1]
    %v263 = vlaneseq
    %v264 = vshrl.u32 %v263, 7
    %v265 = vsub.s32 0, %v264
    %v266 = vrot.slane %v261, %v265
    %v284 = vunpack.c.l.b16 %v245
    %v285 = vunpack.c.l.b16 %v246
    %v286 = vunpack.c.l.b16 %v247
    %v287 = vunpack.c.l.b16 %v248
    %v288 = vunpack.c.l.b16 %v249
    %v289 = vunpack.c.l.b16 %v250
    %v290 = vunpack.c.l.b16 %v251
    %v291 = vunpack.c.l.b16 %v252
    %v292 = vunpack.c.l.b16 %v253
    %v293 = vunpack.c.l.b16 %v254
    %v294 = vunpack.c.l.b16 %v255
    %v295 = vunpack.c.l.b16 %v256
    %v296 = vunpack.c.l.b16 %v257
    %v297 = vunpack.c.l.b16 %v258
    %v298 = vunpack.c.l.b16 %v259
    %v299 = vunpack.c.l.b16 %v260
    %v300 = vpack.c.b16 %v285, %v284
    %v301 = vpack.c.b16 %v287, %v286
    %v302 = vpack.c.b16 %v289, %v288
    %v303 = vpack.c.b16 %v291, %v290
    %v304 = vpack.c.b16 %v293, %v292
    %v305 = vpack.c.b16 %v295, %v294
    %v306 = vpack.c.b16 %v297, %v296
    %v307 = vpack.c.b16 %v299, %v298
    %316 = vmatprep.subr.bf16.mxu0 0
    %317 = vmatpush1.bf16.msra.mxu0 %v300
    %318 = vmatprep.subr.bf16.mxu0 0
    %319 = vmatpush1.bf16.msra.mxu0 %v301
    %320 = vmatprep.subr.bf16.mxu0 0
    %321 = vmatpush1.bf16.msra.mxu0 %v302
    %322 = vmatprep.subr.bf16.mxu0 0
    %323 = vmatpush1.bf16.msra.mxu0 %v303
    %324 = vmatprep.subr.bf16.mxu0 0
    %325 = vmatpush1.bf16.msra.mxu0 %v304
    %326 = vmatprep.subr.bf16.mxu0 0
    %327 = vmatpush1.bf16.msra.mxu0 %v305
    %328 = vmatprep.subr.bf16.mxu0 0
    %329 = vmatpush1.bf16.msra.mxu0 %v306
    %330 = vmatprep.subr.bf16.mxu0 0
    %331 = vmatpush1.bf16.msra.mxu0 %v307
    %332 = vmatprep.subr.bf16.mxu0 0
    %333 = vmatpush1.bf16.msra.mxu0 0
    %334 = vmatprep.subr.bf16.mxu0 0
    %335 = vmatpush1.bf16.msra.mxu0 0
    %336 = vmatprep.subr.bf16.mxu0 0
    %337 = vmatpush1.bf16.msra.mxu0 0
    %338 = vmatprep.subr.bf16.mxu0 0
    %339 = vmatpush1.bf16.msra.mxu0 0
    %340 = vmatprep.subr.bf16.mxu0 0
    %341 = vmatpush1.bf16.msra.mxu0 0
    %342 = vmatprep.subr.bf16.mxu0 0
    %343 = vmatpush1.bf16.msra.mxu0 0
    %344 = vmatprep.subr.bf16.mxu0 0
    %345 = vmatpush1.bf16.msra.mxu0 0
    %346 = vmatprep.subr.bf16.mxu0 0
    %347 = vmatpush1.bf16.msra.mxu0 0
    %348 = vmatprep.mubr.bf16.mxu0 0
    %349 = vmatmul.mubr.bf16.gmra.mrb[0].mxu0 %v243
    %v350 = vpop.f32.mrb[0].mxu0
    %v351 = vadd.f32 %v266, %v350
    %v352 = vpop.f32.mrb[0].mxu0
    %v353 = vpop.f32.mrb[0].mxu0
    %v354 = vadd.f32 %v266, %v353
    %v355 = vpop.f32.mrb[0].mxu0
    %356 = vmatprep.mubr.bf16.mxu0 0
    %357 = vmatmul.mubr.bf16.gmra.mrb[0].mxu0 %v244
    %v358 = vpop.f32.mrb[0].mxu0
    %v359 = vadd.f32 %v266, %v358
    %v360 = vpop.f32.mrb[0].mxu0
    %v361 = vpop.f32.mrb[0].mxu0
    %v362 = vadd.f32 %v266, %v361
    %v363 = vpop.f32.mrb[0].mxu0
    %364 = vdwg.mxu0
    %v365 = vmax.f32 %v351, 0.0
    %v366 = vmax.f32 %v354, 0.0
    %v367 = vmax.f32 %v359, 0.0
    %v368 = vmax.f32 %v362, 0.0
    %v369 = vpack.c.bf16 %v366, %v365
    %v370 = vpack.c.bf16 %v368, %v367
    %v371 = vld [vmem:[#allocation6] sm:$0xf]
    %v372 = vld [vmem:[#allocation6 + $0x4] sm:$0xf]
    %v373 = vld [vmem:[#allocation6 + $0x8] sm:$0xf]
    %v374 = vld [vmem:[#allocation6 + $0xc] sm:$0xf]
    %v375 = vld [vmem:[#allocation6 + $0x10] sm:$0xf]
    %v376 = vld [vmem:[#allocation6 + $0x14] sm:$0xf]
    %v377 = vld [vmem:[#allocation6 + $0x18] sm:$0xf]
    %v378 = vld [vmem:[#allocation6 + $0x1c] sm:$0xf]
    %v379 = vld [vmem:[#allocation6 + $0x20] sm:$0xf]
    %v380 = vld [vmem:[#allocation6 + $0x24] sm:$0xf]
    %v381 = vld [vmem:[#allocation6 + $0x28] sm:$0xf]
    %v382 = vld [vmem:[#allocation6 + $0x2c] sm:$0xf]
    %v383 = vld [vmem:[#allocation6 + $0x30] sm:$0xf]
    %v384 = vld [vmem:[#allocation6 + $0x34] sm:$0xf]
    %v385 = vld [vmem:[#allocation6 + $0x38] sm:$0xf]
    %v386 = vld [vmem:[#allocation6 + $0x3c] sm:$0xf]
    %v387 = vld [vmem:[#allocation7] sm:$0x1]
    %v389 = vlaneseq
    %v390 = vshrl.u32 %v389, 7
    %v391 = vsub.s32 0, %v390
    %v392 = vrot.slane %v387, %v391
    %v410 = vunpack.c.l.b16 %v371
    %v411 = vunpack.c.l.b16 %v372
    %v412 = vunpack.c.l.b16 %v373
    %v413 = vunpack.c.l.b16 %v374
    %v414 = vunpack.c.l.b16 %v375
    %v415 = vunpack.c.l.b16 %v376
    %v416 = vunpack.c.l.b16 %v377
    %v417 = vunpack.c.l.b16 %v378
    %v418 = vunpack.c.l.b16 %v379
    %v419 = vunpack.c.l.b16 %v380
    %v420 = vunpack.c.l.b16 %v381
    %v421 = vunpack.c.l.b16 %v382
    %v422 = vunpack.c.l.b16 %v383
    %v423 = vunpack.c.l.b16 %v384
    %v424 = vunpack.c.l.b16 %v385
    %v425 = vunpack.c.l.b16 %v386
    %v426 = vpack.c.b16 %v411, %v410
    %v427 = vpack.c.b16 %v413, %v412
    %v428 = vpack.c.b16 %v415, %v414
    %v429 = vpack.c.b16 %v417, %v416
    %v430 = vpack.c.b16 %v419, %v418
    %v431 = vpack.c.b16 %v421, %v420
    %v432 = vpack.c.b16 %v423, %v422
    %v433 = vpack.c.b16 %v425, %v424
    %442 = vmatprep.subr.bf16.mxu0 0
    %443 = vmatpush1.bf16.msra.mxu0 %v426
    %444 = vmatprep.subr.bf16.mxu0 0
    %445 = vmatpush1.bf16.msra.mxu0 %v427
    %446 = vmatprep.subr.bf16.mxu0 0
    %447 = vmatpush1.bf16.msra.mxu0 %v428
    %448 = vmatprep.subr.bf16.mxu0 0
    %449 = vmatpush1.bf16.msra.mxu0 %v429
    %450 = vmatprep.subr.bf16.mxu0 0
    %451 = vmatpush1.bf16.msra.mxu0 %v430
    %452 = vmatprep.subr.bf16.mxu0 0
    %453 = vmatpush1.bf16.msra.mxu0 %v431
    %454 = vmatprep.subr.bf16.mxu0 0
    %455 = vmatpush1.bf16.msra.mxu0 %v432
    %456 = vmatprep.subr.bf16.mxu0 0
    %457 = vmatpush1.bf16.msra.mxu0 %v433
    %458 = vmatprep.subr.bf16.mxu0 0
    %459 = vmatpush1.bf16.msra.mxu0 0
    %460 = vmatprep.subr.bf16.mxu0 0
    %461 = vmatpush1.bf16.msra.mxu0 0
    %462 = vmatprep.subr.bf16.mxu0 0
    %463 = vmatpush1.bf16.msra.mxu0 0
    %464 = vmatprep.subr.bf16.mxu0 0
    %465 = vmatpush1.bf16.msra.mxu0 0
    %466 = vmatprep.subr.bf16.mxu0 0
    %467 = vmatpush1.bf16.msra.mxu0 0
    %468 = vmatprep.subr.bf16.mxu0 0
    %469 = vmatpush1.bf16.msra.mxu0 0
    %470 = vmatprep.subr.bf16.mxu0 0
    %471 = vmatpush1.bf16.msra.mxu0 0
    %472 = vmatprep.subr.bf16.mxu0 0
    %473 = vmatpush1.bf16.msra.mxu0 0
    %474 = vmatprep.mubr.bf16.mxu0 0
    %475 = vmatmul.mubr.bf16.gmra.mrb[0].mxu0 %v369
    %v476 = vpop.f32.mrb[0].mxu0
    %v477 = vadd.f32 %v392, %v476
    %v478 = vpop.f32.mrb[0].mxu0
    %v479 = vpop.f32.mrb[0].mxu0
    %v480 = vadd.f32 %v392, %v479
    %v481 = vpop.f32.mrb[0].mxu0
    %482 = vmatprep.mubr.bf16.mxu0 0
    %483 = vmatmul.mubr.bf16.gmra.mrb[0].mxu0 %v370
    %v484 = vpop.f32.mrb[0].mxu0
    %v485 = vadd.f32 %v392, %v484
    %v486 = vpop.f32.mrb[0].mxu0
    %v487 = vpop.f32.mrb[0].mxu0
    %v488 = vadd.f32 %v392, %v487
    %v489 = vpop.f32.mrb[0].mxu0
    %490 = vdwg.mxu0
    %v491 = vmax.f32 %v477, 0.0
    %v492 = vmax.f32 %v480, 0.0
    %v493 = vmax.f32 %v485, 0.0
    %v494 = vmax.f32 %v488, 0.0
    %v495 = vpack.c.bf16 %v492, %v491
    %v496 = vpack.c.bf16 %v494, %v493
    %v497 = vld [vmem:[%s7] sm:$0xf]
    %v498 = vld [vmem:[%s7 + $0x4] sm:$0xf]
    %v499 = vld [vmem:[%s7 + $0x8] sm:$0xf]
    %v500 = vld [vmem:[%s7 + $0xc] sm:$0xf]
    %v501 = vld [vmem:[%s7 + $0x10] sm:$0xf]
    %v502 = vld [vmem:[%s7 + $0x14] sm:$0xf]
    %v503 = vld [vmem:[%s7 + $0x18] sm:$0xf]
    %v504 = vld [vmem:[%s7 + $0x1c] sm:$0xf]
    %v505 = vld [vmem:[%s7 + $0x20] sm:$0xf]
    %v506 = vld [vmem:[%s7 + $0x24] sm:$0xf]
    %v507 = vld [vmem:[%s7 + $0x28] sm:$0xf]
    %v508 = vld [vmem:[%s7 + $0x2c] sm:$0xf]
    %v509 = vld [vmem:[%s7 + $0x30] sm:$0xf]
    %v510 = vld [vmem:[%s7 + $0x34] sm:$0xf]
    %v511 = vld [vmem:[%s7 + $0x38] sm:$0xf]
    %v512 = vld [vmem:[%s7 + $0x3c] sm:$0xf]
    %v513 = vld [vmem:[%s8] sm:$0x1]
    %v515 = vlaneseq
    %v516 = vshrl.u32 %v515, 7
    %v517 = vsub.s32 0, %v516
    %v518 = vrot.slane %v513, %v517
    %v536 = vunpack.c.l.b16 %v497
    %v537 = vunpack.c.l.b16 %v498
    %v538 = vunpack.c.l.b16 %v499
    %v539 = vunpack.c.l.b16 %v500
    %v540 = vunpack.c.l.b16 %v501
    %v541 = vunpack.c.l.b16 %v502
    %v542 = vunpack.c.l.b16 %v503
    %v543 = vunpack.c.l.b16 %v504
    %v544 = vunpack.c.l.b16 %v505
    %v545 = vunpack.c.l.b16 %v506
    %v546 = vunpack.c.l.b16 %v507
    %v547 = vunpack.c.l.b16 %v508
    %v548 = vunpack.c.l.b16 %v509
    %v549 = vunpack.c.l.b16 %v510
    %v550 = vunpack.c.l.b16 %v511
    %v551 = vunpack.c.l.b16 %v512
    %v552 = vpack.c.b16 %v537, %v536
    %v553 = vpack.c.b16 %v539, %v538
    %v554 = vpack.c.b16 %v541, %v540
    %v555 = vpack.c.b16 %v543, %v542
    %v556 = vpack.c.b16 %v545, %v544
    %v557 = vpack.c.b16 %v547, %v546
    %v558 = vpack.c.b16 %v549, %v548
    %v559 = vpack.c.b16 %v551, %v550
    %568 = vmatprep.subr.bf16.mxu0 0
    %569 = vmatpush1.bf16.msra.mxu0 %v552
    %570 = vmatprep.subr.bf16.mxu0 0
    %571 = vmatpush1.bf16.msra.mxu0 %v553
    %572 = vmatprep.subr.bf16.mxu0 0
    %573 = vmatpush1.bf16.msra.mxu0 %v554
    %574 = vmatprep.subr.bf16.mxu0 0
    %575 = vmatpush1.bf16.msra.mxu0 %v555
    %576 = vmatprep.subr.bf16.mxu0 0
    %577 = vmatpush1.bf16.msra.mxu0 %v556
    %578 = vmatprep.subr.bf16.mxu0 0
    %579 = vmatpush1.bf16.msra.mxu0 %v557
    %580 = vmatprep.subr.bf16.mxu0 0
    %581 = vmatpush1.bf16.msra.mxu0 %v558
    %582 = vmatprep.subr.bf16.mxu0 0
    %583 = vmatpush1.bf16.msra.mxu0 %v559
    %584 = vmatprep.subr.bf16.mxu0 0
    %585 = vmatpush1.bf16.msra.mxu0 0
    %586 = vmatprep.subr.bf16.mxu0 0
    %587 = vmatpush1.bf16.msra.mxu0 0
    %588 = vmatprep.subr.bf16.mxu0 0
    %589 = vmatpush1.bf16.msra.mxu0 0
    %590 = vmatprep.subr.bf16.mxu0 0
    %591 = vmatpush1.bf16.msra.mxu0 0
    %592 = vmatprep.subr.bf16.mxu0 0
    %593 = vmatpush1.bf16.msra.mxu0 0
    %594 = vmatprep.subr.bf16.mxu0 0
    %595 = vmatpush1.bf16.msra.mxu0 0
    %596 = vmatprep.subr.bf16.mxu0 0
    %597 = vmatpush1.bf16.msra.mxu0 0
    %598 = vmatprep.subr.bf16.mxu0 0
    %599 = vmatpush1.bf16.msra.mxu0 0
    %600 = vmatprep.mubr.bf16.mxu0 0
    %601 = vmatmul.mubr.bf16.gmra.mrb[0].mxu0 %v495
    %v602 = vpop.f32.mrb[0].mxu0
    %v603 = vadd.f32 %v518, %v602
    %v604 = vpop.f32.mrb[0].mxu0
    %v605 = vpop.f32.mrb[0].mxu0
    %v606 = vadd.f32 %v518, %v605
    %v607 = vpop.f32.mrb[0].mxu0
    %608 = vmatprep.mubr.bf16.mxu0 0
    %609 = vmatmul.mubr.bf16.gmra.mrb[0].mxu0 %v496
    %v610 = vpop.f32.mrb[0].mxu0
    %v611 = vadd.f32 %v518, %v610
    %v612 = vpop.f32.mrb[0].mxu0
    %v613 = vpop.f32.mrb[0].mxu0
    %v614 = vadd.f32 %v518, %v613
    %v615 = vpop.f32.mrb[0].mxu0
    %616 = vdwg.mxu0
    %v617 = vmax.f32 %v603, 0.0
    %v618 = vmax.f32 %v606, 0.0
    %v619 = vmax.f32 %v611, 0.0
    %v620 = vmax.f32 %v614, 0.0
    %v621 = vpack.c.bf16 %v618, %v617
    %v622 = vpack.c.bf16 %v620, %v619
    %v623 = vld [vmem:[#allocation9] sm:$0xf]
    %v624 = vld [vmem:[#allocation9 + $0x4] sm:$0xf]
    %v625 = vld [vmem:[#allocation9 + $0x8] sm:$0xf]
    %v626 = vld [vmem:[#allocation9 + $0xc] sm:$0xf]
    %v627 = vld [vmem:[#allocation9 + $0x10] sm:$0xf]
    %v628 = vld [vmem:[#allocation9 + $0x14] sm:$0xf]
    %v629 = vld [vmem:[#allocation9 + $0x18] sm:$0xf]
    %v630 = vld [vmem:[#allocation9 + $0x1c] sm:$0xf]
    %v631 = vld [vmem:[#allocation9 + $0x20] sm:$0xf]
    %v632 = vld [vmem:[#allocation9 + $0x24] sm:$0xf]
    %v633 = vld [vmem:[#allocation9 + $0x28] sm:$0xf]
    %v634 = vld [vmem:[#allocation9 + $0x2c] sm:$0xf]
    %v635 = vld [vmem:[#allocation9 + $0x30] sm:$0xf]
    %v636 = vld [vmem:[#allocation9 + $0x34] sm:$0xf]
    %v637 = vld [vmem:[#allocation9 + $0x38] sm:$0xf]
    %v638 = vld [vmem:[#allocation9 + $0x3c] sm:$0xf]
    %v639 = vld [vmem:[%s10] sm:$0x1]
    %v641 = vlaneseq
    %v642 = vshrl.u32 %v641, 7
    %v643 = vsub.s32 0, %v642
    %v644 = vrot.slane %v639, %v643
    %v662 = vunpack.c.l.b16 %v623
    %v663 = vunpack.c.l.b16 %v624
    %v664 = vunpack.c.l.b16 %v625
    %v665 = vunpack.c.l.b16 %v626
    %v666 = vunpack.c.l.b16 %v627
    %v667 = vunpack.c.l.b16 %v628
    %v668 = vunpack.c.l.b16 %v629
    %v669 = vunpack.c.l.b16 %v630
    %v670 = vunpack.c.l.b16 %v631
    %v671 = vunpack.c.l.b16 %v632
    %v672 = vunpack.c.l.b16 %v633
    %v673 = vunpack.c.l.b16 %v634
    %v674 = vunpack.c.l.b16 %v635
    %v675 = vunpack.c.l.b16 %v636
    %v676 = vunpack.c.l.b16 %v637
    %v677 = vunpack.c.l.b16 %v638
    %v678 = vpack.c.b16 %v663, %v662
    %v679 = vpack.c.b16 %v665, %v664
    %v680 = vpack.c.b16 %v667, %v666
    %v681 = vpack.c.b16 %v669, %v668
    %v682 = vpack.c.b16 %v671, %v670
    %v683 = vpack.c.b16 %v673, %v672
    %v684 = vpack.c.b16 %v675, %v674
    %v685 = vpack.c.b16 %v677, %v676
    %694 = vmatprep.subr.bf16.mxu0 0
    %695 = vmatpush1.bf16.msra.mxu0 %v678
    %696 = vmatprep.subr.bf16.mxu0 0
    %697 = vmatpush1.bf16.msra.mxu0 %v679
    %698 = vmatprep.subr.bf16.mxu0 0
    %699 = vmatpush1.bf16.msra.mxu0 %v680
    %700 = vmatprep.subr.bf16.mxu0 0
    %701 = vmatpush1.bf16.msra.mxu0 %v681
    %702 = vmatprep.subr.bf16.mxu0 0
    %703 = vmatpush1.bf16.msra.mxu0 %v682
    %704 = vmatprep.subr.bf16.mxu0 0
    %705 = vmatpush1.bf16.msra.mxu0 %v683
    %706 = vmatprep.subr.bf16.mxu0 0
    %707 = vmatpush1.bf16.msra.mxu0 %v684
    %708 = vmatprep.subr.bf16.mxu0 0
    %709 = vmatpush1.bf16.msra.mxu0 %v685
    %710 = vmatprep.subr.bf16.mxu0 0
    %711 = vmatpush1.bf16.msra.mxu0 0
    %712 = vmatprep.subr.bf16.mxu0 0
    %713 = vmatpush1.bf16.msra.mxu0 0
    %714 = vmatprep.subr.bf16.mxu0 0
    %715 = vmatpush1.bf16.msra.mxu0 0
    %716 = vmatprep.subr.bf16.mxu0 0
    %717 = vmatpush1.bf16.msra.mxu0 0
    %718 = vmatprep.subr.bf16.mxu0 0
    %719 = vmatpush1.bf16.msra.mxu0 0
    %720 = vmatprep.subr.bf16.mxu0 0
    %721 = vmatpush1.bf16.msra.mxu0 0
    %722 = vmatprep.subr.bf16.mxu0 0
    %723 = vmatpush1.bf16.msra.mxu0 0
    %724 = vmatprep.subr.bf16.mxu0 0
    %725 = vmatpush1.bf16.msra.mxu0 0
    %726 = vmatprep.mubr.bf16.mxu0 0
    %727 = vmatmul.mubr.bf16.gmra.mrb[0].mxu0 %v621
    %v728 = vpop.f32.mrb[0].mxu0
    %v729 = vadd.f32 %v644, %v728
    %v730 = vpop.f32.mrb[0].mxu0
    %v731 = vpop.f32.mrb[0].mxu0
    %v732 = vadd.f32 %v644, %v731
    %v733 = vpop.f32.mrb[0].mxu0
    %734 = vmatprep.mubr.bf16.mxu0 0
    %735 = vmatmul.mubr.bf16.gmra.mrb[0].mxu0 %v622
    %v736 = vpop.f32.mrb[0].mxu0
    %v737 = vadd.f32 %v644, %v736
    %v738 = vpop.f32.mrb[0].mxu0
    %v739 = vpop.f32.mrb[0].mxu0
    %v740 = vadd.f32 %v644, %v739
    %v741 = vpop.f32.mrb[0].mxu0
    %742 = vdwg.mxu0
    %v743 = vmax.f32 %v729, 0.0
    %v744 = vmax.f32 %v732, 0.0
    %v745 = vmax.f32 %v737, 0.0
    %v746 = vmax.f32 %v740, 0.0
    %v747 = vpack.c.bf16 %v744, %v743
    %v748 = vpack.c.bf16 %v746, %v745
    %v749 = vld [vmem:[%s11] sm:$0xf]
    %v750 = vld [vmem:[%s11 + $0x4] sm:$0xf]
    %v751 = vld [vmem:[%s11 + $0x8] sm:$0xf]
    %v752 = vld [vmem:[%s11 + $0xc] sm:$0xf]
    %v753 = vld [vmem:[%s11 + $0x10] sm:$0xf]
    %v754 = vld [vmem:[%s11 + $0x14] sm:$0xf]
    %v755 = vld [vmem:[%s11 + $0x18] sm:$0xf]
    %v756 = vld [vmem:[%s11 + $0x1c] sm:$0xf]
    %v757 = vld [vmem:[%s11 + $0x20] sm:$0xf]
    %v758 = vld [vmem:[%s11 + $0x24] sm:$0xf]
    %v759 = vld [vmem:[%s11 + $0x28] sm:$0xf]
    %v760 = vld [vmem:[%s11 + $0x2c] sm:$0xf]
    %v761 = vld [vmem:[%s11 + $0x30] sm:$0xf]
    %v762 = vld [vmem:[%s11 + $0x34] sm:$0xf]
    %v763 = vld [vmem:[%s11 + $0x38] sm:$0xf]
    %v764 = vld [vmem:[%s11 + $0x3c] sm:$0xf]
    %v765 = vld [vmem:[%s12] sm:$0x1]
    %v767 = vlaneseq
    %v768 = vshrl.u32 %v767, 7
    %v769 = vsub.s32 0, %v768
    %v770 = vrot.slane %v765, %v769
    %v788 = vunpack.c.l.b16 %v749
    %v789 = vunpack.c.l.b16 %v750
    %v790 = vunpack.c.l.b16 %v751
    %v791 = vunpack.c.l.b16 %v752
    %v792 = vunpack.c.l.b16 %v753
    %v793 = vunpack.c.l.b16 %v754
    %v794 = vunpack.c.l.b16 %v755
    %v795 = vunpack.c.l.b16 %v756
    %v796 = vunpack.c.l.b16 %v757
    %v797 = vunpack.c.l.b16 %v758
    %v798 = vunpack.c.l.b16 %v759
    %v799 = vunpack.c.l.b16 %v760
    %v800 = vunpack.c.l.b16 %v761
    %v801 = vunpack.c.l.b16 %v762
    %v802 = vunpack.c.l.b16 %v763
    %v803 = vunpack.c.l.b16 %v764
    %v804 = vpack.c.b16 %v789, %v788
    %v805 = vpack.c.b16 %v791, %v790
    %v806 = vpack.c.b16 %v793, %v792
    %v807 = vpack.c.b16 %v795, %v794
    %v808 = vpack.c.b16 %v797, %v796
    %v809 = vpack.c.b16 %v799, %v798
    %v810 = vpack.c.b16 %v801, %v800
    %v811 = vpack.c.b16 %v803, %v802
    %820 = vmatprep.subr.bf16.mxu0 0
    %821 = vmatpush1.bf16.msra.mxu0 %v804
    %822 = vmatprep.subr.bf16.mxu0 0
    %823 = vmatpush1.bf16.msra.mxu0 %v805
    %824 = vmatprep.subr.bf16.mxu0 0
    %825 = vmatpush1.bf16.msra.mxu0 %v806
    %826 = vmatprep.subr.bf16.mxu0 0
    %827 = vmatpush1.bf16.msra.mxu0 %v807
    %828 = vmatprep.subr.bf16.mxu0 0
    %829 = vmatpush1.bf16.msra.mxu0 %v808
    %830 = vmatprep.subr.bf16.mxu0 0
    %831 = vmatpush1.bf16.msra.mxu0 %v809
    %832 = vmatprep.subr.bf16.mxu0 0
    %833 = vmatpush1.bf16.msra.mxu0 %v810
    %834 = vmatprep.subr.bf16.mxu0 0
    %835 = vmatpush1.bf16.msra.mxu0 %v811
    %836 = vmatprep.subr.bf16.mxu0 0
    %837 = vmatpush1.bf16.msra.mxu0 0
    %838 = vmatprep.subr.bf16.mxu0 0
    %839 = vmatpush1.bf16.msra.mxu0 0
    %840 = vmatprep.subr.bf16.mxu0 0
    %841 = vmatpush1.bf16.msra.mxu0 0
    %842 = vmatprep.subr.bf16.mxu0 0
    %843 = vmatpush1.bf16.msra.mxu0 0
    %844 = vmatprep.subr.bf16.mxu0 0
    %845 = vmatpush1.bf16.msra.mxu0 0
    %846 = vmatprep.subr.bf16.mxu0 0
    %847 = vmatpush1.bf16.msra.mxu0 0
    %848 = vmatprep.subr.bf16.mxu0 0
    %849 = vmatpush1.bf16.msra.mxu0 0
    %850 = vmatprep.subr.bf16.mxu0 0
    %851 = vmatpush1.bf16.msra.mxu0 0
    %852 = vmatprep.mubr.bf16.mxu0 0
    %853 = vmatmul.mubr.bf16.gmra.mrb[0].mxu0 %v747
    %v854 = vpop.f32.mrb[0].mxu0
    %v855 = vadd.f32 %v770, %v854
    %v856 = vpop.f32.mrb[0].mxu0
    %v857 = vpop.f32.mrb[0].mxu0
    %v858 = vadd.f32 %v770, %v857
    %v859 = vpop.f32.mrb[0].mxu0
    %860 = vmatprep.mubr.bf16.mxu0 0
    %861 = vmatmul.mubr.bf16.gmra.mrb[0].mxu0 %v748
    %v862 = vpop.f32.mrb[0].mxu0
    %v863 = vadd.f32 %v770, %v862
    %v864 = vpop.f32.mrb[0].mxu0
    %v865 = vpop.f32.mrb[0].mxu0
    %v866 = vadd.f32 %v770, %v865
    %v867 = vpop.f32.mrb[0].mxu0
    %868 = vdwg.mxu0
    %v869 = vmax.f32 %v855, 0.0
    %v870 = vmax.f32 %v858, 0.0
    %v871 = vmax.f32 %v863, 0.0
    %v872 = vmax.f32 %v866, 0.0
    %873 = vxpose.xlu0.b32.start [1/16] %v869, 128
    %874 = vxpose.xlu0.b32.cont [2/16] %v870, 128
    %875 = vxpose.xlu0.b32.cont [3/16] %v871, 128
    %876 = vxpose.xlu0.b32.cont [4/16] %v872, 128
    %877 = vxpose.xlu0.b32.cont [5/16] 0.0, 128
    %878 = vxpose.xlu0.b32.cont [6/16] 0.0, 128
    %879 = vxpose.xlu0.b32.cont [7/16] 0.0, 128
    %880 = vxpose.xlu0.b32.cont [8/16] 0.0, 128
    %881 = vxpose.xlu0.b32.cont [9/16] 0.0, 128
    %882 = vxpose.xlu0.b32.cont [10/16] 0.0, 128
    %883 = vxpose.xlu0.b32.cont [11/16] 0.0, 128
    %884 = vxpose.xlu0.b32.cont [12/16] 0.0, 128
    %885 = vxpose.xlu0.b32.cont [13/16] 0.0, 128
    %886 = vxpose.xlu0.b32.cont [14/16] 0.0, 128
    %887 = vxpose.xlu0.b32.cont [15/16] 0.0, 128
    %888 = vxpose.xlu0.b32.end [16/16] 0.0, 128
    %v889 = vpop.trf.xlu0
    %v890 = vpop.trf.xlu0
    %v891 = vpop.trf.xlu0
    %v892 = vpop.trf.xlu0
    %v893 = vpop.trf.xlu0
    %v894 = vpop.trf.xlu0
    %v895 = vpop.trf.xlu0
    %v896 = vpop.trf.xlu0
    %v897 = vpop.trf.xlu0
    %v898 = vpop.trf.xlu0
    %v899 = vpop.trf.xlu0
    %v900 = vpop.trf.xlu0
    %v901 = vpop.trf.xlu0
    %v902 = vpop.trf.xlu0
    %v903 = vpop.trf.xlu0
    %v904 = vpop.trf.xlu0
    %v905 = vpack.c.bf16 %v890, %v889
    %v906 = vpack.c.bf16 %v892, %v891
    %v907 = vpack.c.bf16 %v894, %v893
    %v908 = vpack.c.bf16 %v896, %v895
    %v909 = vld [vmem:[%s13] sm:$0xf]
    %v910 = vld [vmem:[%s14] sm:$0xff]
    %912 = vset.pattern.permute.xlu0 0
    %913 = vperm.xlu0 %912, %v910
    %v914 = vpop.permute.xlu0 %913
    %vm916 = vcmask 523264
    %v918 = vsel %vm916, %v909, 0
    %920 = vmatprep.subr.bf16.mxu0 0
    %921 = vmatpush1.bf16.msra.mxu0 %v905
    %922 = vmatprep.subr.bf16.mxu0 0
    %923 = vmatpush1.bf16.msra.mxu0 %v906
    %924 = vmatprep.subr.bf16.mxu0 0
    %925 = vmatpush1.bf16.msra.mxu0 %v907
    %926 = vmatprep.subr.bf16.mxu0 0
    %927 = vmatpush1.bf16.msra.mxu0 %v908
    %928 = vmatprep.subr.bf16.mxu0 0
    %929 = vmatpush1.bf16.msra.mxu0 0
    %930 = vmatprep.subr.bf16.mxu0 0
    %931 = vmatpush1.bf16.msra.mxu0 0
    %932 = vmatprep.subr.bf16.mxu0 0
    %933 = vmatpush1.bf16.msra.mxu0 0
    %934 = vmatprep.subr.bf16.mxu0 0
    %935 = vmatpush1.bf16.msra.mxu0 0
    %936 = vmatprep.subr.bf16.mxu0 0
    %937 = vmatpush1.bf16.msra.mxu0 0
    %938 = vmatprep.subr.bf16.mxu0 0
    %939 = vmatpush1.bf16.msra.mxu0 0
    %940 = vmatprep.subr.bf16.mxu0 0
    %941 = vmatpush1.bf16.msra.mxu0 0
    %942 = vmatprep.subr.bf16.mxu0 0
    %943 = vmatpush1.bf16.msra.mxu0 0
    %944 = vmatprep.subr.bf16.mxu0 0
    %945 = vmatpush1.bf16.msra.mxu0 0
    %946 = vmatprep.subr.bf16.mxu0 0
    %947 = vmatpush1.bf16.msra.mxu0 0
    %948 = vmatprep.subr.bf16.mxu0 0
    %949 = vmatpush1.bf16.msra.mxu0 0
    %950 = vmatprep.subr.bf16.mxu0 0
    %951 = vmatpush1.bf16.msra.mxu0 0
    %952 = vmatprep.mubr.bf16.mxu0 0
    %953 = vmatmul.mubr.bf16.gmra.mrb[0].mxu0 %v918
    %v954 = vpop.f32.mrb[0].mxu0
    %v955 = vadd.f32 %v914, %v954
    %v956 = vpop.f32.mrb[0].mxu0
    %v957 = vpop.f32.mrb[0].mxu0
    %v958 = vpop.f32.mrb[0].mxu0
    %959 = vdwg.mxu0
    %vm960 = vcmask 261120
    %961 = vst.msk [vmem:[%s15] sm:$0xff] %vm960, %v955
    // Predicated region
    $region82: #{dann_forward.1} parent=1 // pred_check
      _
    $region83: #{dann_forward.1} parent=1 // pred_check_branch
      %963 = sbr.rel (0) target = $region85
    $region84: #{dann_forward.1} parent=1 // pred_region
      _
    $region85: #{dann_forward.1} parent=1 // pred_fallthru
      _
    // Predicated region
    $region86: #{dann_forward.1} parent=1 // pred_check
      _
    $region87: #{dann_forward.1} parent=1 // pred_check_branch
      %965 = sbr.rel (0) target = $region89
    $region88: #{dann_forward.1} parent=1 // pred_region
      _
    $region89: #{dann_forward.1} parent=1 // pred_fallthru
      _
    %966 = vsyncpa [#allocation3], 1
    %967 = vsyncpa [#allocation5], 1
    %968 = vsyncpa [#allocation8], 1

</llo_original>
